<compile_context>
chip_gen: v6e
topology: v6e:2x2x1
jax: 0.10.0
libtpu: 0.0.40
codegen_flags: <defaults>
</compile_context>

<pallas_src>
import math

import jax
import jax.numpy as jnp
from jax.experimental import pallas as pl
from jax.experimental.pallas import tpu as pltpu


_LANES = 128                      # TPU vreg lane width
_MAX_PACKED_WIDTH = 512           # cap on the kron-packed weight width
_TARGET_BLOCK_BYTES = 4 << 20     # ~4 MiB input blocks (85-90% of HBM roofline)
_MIN_TM_ROWS = 1024               # don't shatter the grid into sub-512KiB steps
_MIN_PALLAS_ELEMS = 2048          # below this, launch overhead dominates -> einsum
_VMEM_LIMIT_BYTES = 48 << 20      # > v5e 16 MiB default scoped, < v7x 64 MiB physical


def _round_up(x, m):
    return ((x + m - 1) // m) * m


def _pick_tm(m, row_bytes, align, tm_max=None):
    """Rows of the lane-dense view per grid step (all static Python ints)."""
    if m <= align:
        return m                              # single full-extent block (always legal)
    m_cap = (m // align) * align              # largest aligned tile that fits inside m
    blk_cap = max(align, (_TARGET_BLOCK_BYTES // row_bytes) // align * align)
    # Aim for >= 4 grid steps (prefetch/writeback overlap + v7x megacore split),
    # capped at ~4 MiB blocks ...
    tm = min(blk_cap, _round_up(pl.cdiv(m, 4), align))
    # ... but never below ~1024 rows per step (per-step overhead ~0.35 us).
    tm = max(tm, min(_MIN_TM_ROWS, m_cap))
    tm = min(tm, m_cap)
    if tm_max is not None:
        tm = min(tm, max(align, (tm_max // align) * align))
    # Prefer an even step count so v7x's two TensorCores stay balanced.
    nt = pl.cdiv(m, tm)
    if nt > 1 and nt % 2 == 1:
        tm_even = max(align, _round_up(pl.cdiv(m, nt + 1), align))
        if tm_even <= m_cap:
            tm = tm_even
    return tm


def _rows_matmul_kernel(x_ref, w_ref, o_ref):
    # One MXU matmul per tile; f32 accumulation, store in the output dtype.
    # No transposes and no layout work inside the kernel.
    o_ref[...] = jnp.dot(
        x_ref[...], w_ref[...], preferred_element_type=jnp.float32
    ).astype(o_ref.dtype)


def _rows_matmul(x, w, out_dtype, *, tm_max=None):
    """out[i, :] = x[i, :] @ w, streamed over rows with a pipelined 1-D grid.

    No input pad and no output slice: the grid is ragged (cdiv) and Pallas
    masks the edge block's writes.
    """
    m, k = x.shape
    kw, kout = w.shape
    assert k == kw, (x.shape, w.shape)

    in_item = jnp.dtype(x.dtype).itemsize
    out_item = jnp.dtype(out_dtype).itemsize
    align = max(8, 32 // in_item)             # sublane-safe: 8 f32 / 16 bf16 / 32 int8
    tm = _pick_tm(m, k * in_item, align, tm_max)
    ntiles = pl.cdiv(m, tm)                   # ragged last block: masked edge writes

    cost = pl.CostEstimate(
        flops=2 * m * k * kout,
        transcendentals=0,
        bytes_accessed=m * k * in_item + k * kout * in_item + m * kout * out_item,
    )
    return pl.pallas_call(
        _rows_matmul_kernel,
        out_shape=jax.ShapeDtypeStruct((m, kout), out_dtype),
        grid=(ntiles,),
        in_specs=[
            pl.BlockSpec((tm, k), lambda i: (i, 0)),
            # Constant block index -> weight stays resident in VMEM; single
            # buffer gives the saved VMEM back to the streaming tiles.
            pl.BlockSpec((k, kout), lambda i: (0, 0), pipeline_mode=pl.Buffered(1)),
        ],
        out_specs=pl.BlockSpec((tm, kout), lambda i: (i, 0)),
        compiler_params=pltpu.CompilerParams(
            # Megacore split on v7x; measured no-op on single-TC v5e/v6e.
            dimension_semantics=("parallel",),
            vmem_limit_bytes=_VMEM_LIMIT_BYTES,
        ),
        cost_estimate=cost,
    )(x, w.astype(x.dtype))


def control_affine_linear_force(q, v, u, B, *, tm_max=None,
                                min_pallas_elems=_MIN_PALLAS_ELEMS):
    """Pallas implementation of ControlAffineLinearForce.forward.

    q: (N, qdim)  -- only used for shape checks (as in the PyTorch module)
    v: (N, qdim)  -- unused (kept for signature parity)
    u: (N, qdim)
    B: (1, qdim, qdim) parameter
    returns F: (N, qdim, 1)
    """
    N, qdim = q.shape
    assert u.shape == (N, qdim), u.shape
    assert B.shape == (1, qdim, qdim), B.shape

    out_dtype = u.dtype
    b2d = B[0].astype(u.dtype)   # (qdim, qdim); bf16 inputs stay bf16 into the MXU
    bt = b2d.T                   # transpose hoisted out of the kernel (one-time, tiny)

    if N * qdim < min_pallas_elems:
        # Tiny problem: a standalone pallas_call is pure launch overhead.
        F = jnp.einsum("ij,nj->ni", b2d, u).astype(out_dtype)
        return F.reshape(N, qdim, 1)

    packed_w = math.lcm(qdim, _LANES)          # lane-dense packed row width
    if packed_w <= _MAX_PACKED_WIDTH:
        # Lane-dense path: free reshape of row-major u into (N*qdim/W, W) rows
        # and a block-diagonal kron(I_g, B^T) weight, so both input and output
        # blocks are a multiple of 128 lanes wide (dense DMA, unmasked stores).
        g = packed_w // qdim
        n_main = (N // g) * g
        parts = []
        if n_main > 0:
            w = bt if g == 1 else jnp.kron(jnp.eye(g, dtype=u.dtype), bt)
            x_src = u if n_main == N else u[:n_main]
            x = x_src.reshape(n_main // g, packed_w)   # contiguous => free reshape
            out2d = _rows_matmul(x, w, out_dtype, tm_max=tm_max)
            parts.append(out2d.reshape(n_main, qdim))
        if n_main < N:
            # < g leftover rows: tiny einsum instead of a materializing pad of
            # the whole input (saves a full HBM pass when N % g != 0).
            tail = jnp.einsum("ij,nj->ni", b2d, u[n_main:]).astype(out_dtype)
            parts.append(tail)
        F2d = parts[0] if len(parts) == 1 else jnp.concatenate(parts, axis=0)
    else:
        # Awkward qdim (lcm with 128 too wide to kron-pack): full-extent qdim
        # blocks, still pipelined, transpose-free and unpadded.
        F2d = _rows_matmul(u, bt, out_dtype, tm_max=tm_max)

    return F2d.reshape(N, qdim, 1)


def _reference(u, B):
    return jnp.einsum(
        "oij,nj->ni", B.astype(jnp.float32), u.astype(jnp.float32)
    )[..., None]


if __name__ == "__main__":
    key = jax.random.PRNGKey(0)

    def make_case(case_key, N, qdim, dtype):
        kq, kv, ku, kb = jax.random.split(case_key, 4)
        q = jax.random.normal(kq, (N, qdim), dtype=jnp.float32).astype(dtype)
        v = jax.random.normal(kv, (N, qdim), dtype=jnp.float32).astype(dtype)
        u = jax.random.normal(ku, (N, qdim), dtype=jnp.float32).astype(dtype)
        # "usually diagonal" B plus a small dense perturbation to exercise mixing.
        b = (1.5 * jnp.eye(qdim, dtype=jnp.float32)
             + 0.1 * jax.random.normal(kb, (qdim, qdim), dtype=jnp.float32))
        return q, v, u, b[None].astype(dtype)

    cases = [
        # (N, qdim, dtype, tm_max, atol, rtol, description)
        (4096, 4, jnp.float32, None, 2e-2, 2e-2, "packed lane-dense, aligned"),
        (4096, 4, jnp.float32, 40,   2e-2, 2e-2, "packed, multi-step ragged grid"),
        (1000, 4, jnp.float32, None, 2e-2, 2e-2, "packed, N % g != 0 (einsum tail)"),
        (300, 24, jnp.float32, None, 2e-2, 2e-2, "packed wide (qdim !| 128 -> W=384)"),
        (2048, 4, jnp.bfloat16, None, 1e-1, 5e-2, "packed bf16"),
        (500, 5, jnp.float32, None, 2e-2, 2e-2, "general fallback (lcm > 512)"),
        (2, 4, jnp.float32, None, 1e-4, 1e-4, "tiny einsum fallback"),
    ]

    keys = jax.random.split(key, len(cases))
    for case_key, (N, qdim, dtype, tm_max, atol, rtol, desc) in zip(keys, cases):
        q, v, u, B = make_case(case_key, N, qdim, dtype)
        F = control_affine_linear_force(q, v, u, B, tm_max=tm_max)
        F = jax.block_until_ready(F)
        assert F.shape == (N, qdim, 1), (desc, F.shape)
        F_ref = _reference(u, B)
        assert jnp.allclose(F.astype(jnp.float32), F_ref, atol=atol, rtol=rtol), desc

    print("KERNEL_OK")
</pallas_src>

<mosaic_0001>
module attributes {stable_mosaic.version = 11 : i64} {
  func.func @_rows_matmul_kernel(%arg0: i32, %arg1: memref<128x128xf32, #tpu.memory_space<vmem>>, %arg2: memref<128x128xf32, #tpu.memory_space<vmem>>, %arg3: memref<128x128xf32, #tpu.memory_space<vmem>>) attributes {dimension_semantics = [#tpu.dimension_semantics<parallel>], iteration_bounds = array<i64: 1>, scalar_prefetch = 0 : i64, scratch_operands = 0 : i64, tpu.core_type = #tpu.core_type<tc>, window_params = [{transform_indices = @transform_0, window_bounds = array<i64: 128, 128>}, {pipeline_mode = #tpu.pipeline_mode<synchronous>, transform_indices = @transform_1, window_bounds = array<i64: 128, 128>}, {transform_indices = @transform_2, window_bounds = array<i64: 128, 128>}]} {
    %c0 = arith.constant 0 : index
    %c0_0 = arith.constant 0 : index
    %0 = vector.load %arg1[%c0, %c0_0] : memref<128x128xf32, #tpu.memory_space<vmem>>, vector<128x128xf32>
    %c0_1 = arith.constant 0 : index
    %c0_2 = arith.constant 0 : index
    %1 = vector.load %arg2[%c0_1, %c0_2] : memref<128x128xf32, #tpu.memory_space<vmem>>, vector<128x128xf32>
    %cst = arith.constant dense<0.000000e+00> : vector<128x128xf32>
    %2 = tpu.matmul %0, %1, %cst {dimension_numbers = #tpu.dot_dimension_numbers<[1], [0], [0], [1], [0, 0, 1, 1], [], []>} : vector<128x128xf32>, vector<128x128xf32>, vector<128x128xf32> -> vector<128x128xf32>
    %c0_3 = arith.constant 0 : index
    %c0_4 = arith.constant 0 : index
    %3 = vector.load %arg3[%c0_3, %c0_4] : memref<128x128xf32, #tpu.memory_space<vmem>>, vector<128x128xf32>
    tpu.vector_store %arg3[%c0_3, %c0_4], %2 {strides = array<i32>} : memref<128x128xf32, #tpu.memory_space<vmem>>, vector<128x128xf32>,
    return
  }
  func.func @transform_0(%arg0: i32) -> (i32, i32) {
    %c0_i32 = arith.constant 0 : i32
    %c0_i32_0 = arith.constant 0 : i32
    return %arg0, %c0_i32 : i32, i32
  }
  func.func @transform_1(%arg0: i32) -> (i32, i32) {
    %c0_i32 = arith.constant 0 : i32
    %c0_i32_0 = arith.constant 0 : i32
    %c0_i32_1 = arith.constant 0 : i32
    return %c0_i32, %c0_i32_0 : i32, i32
  }
  func.func @transform_2(%arg0: i32) -> (i32, i32) {
    %c0_i32 = arith.constant 0 : i32
    %c0_i32_0 = arith.constant 0 : i32
    return %arg0, %c0_i32 : i32, i32
  }
}

</mosaic_0001>

<llo_original>
// kernel: tpu_custom_call.1
$region0: #{tpu_custom_call.1}
  #allocation0 [shape = 'u32[]', space=smem, size = 0x4, offset = 0x4, fixed_abs, tag = 'smem constant byte address 0x4 - core index']
  #allocation1 [shape = 'u32[144,128]{1,0:T(1,128)}', space=vmem, size = 0x12000, scoped, tag = 'internal scratch']
  %s0 = inlined_call_operand.hbm [shape: f32[128,128], index: 0, kind: input, shape index: {}]
  %s1 = inlined_call_operand.hbm [shape: f32[128,128], index: 1, kind: input, shape index: {}]
  %s2 = inlined_call_operand.hbm [shape: f32[128,128], index: 2, kind: output, shape index: {}]
  %s3 = sld [smem:[#allocation0]]
  $region26: #{tpu_custom_call.1} parent=0
    _
  %s5 = ssub.s32 1, %s3
  %s6 = scalar_select 0, %s5, %s3
  $region1: #{tpu_custom_call.1} parent=0
    #allocation2 [shape = 'u8[65536]{0}', space=vmem, size = 0x10000, scoped, tag = 'input window, operand 0, single buffered']
    #allocation3 [shape = 's32[1]{0}', space=sflag, size = 0x4, scoped, tag = 'scoped memory for tpu_custom_call.1']
    #allocation4 [shape = 's32[1]{0}', space=sflag, size = 0x4, scoped, tag = 'scoped memory for tpu_custom_call.1']
    #allocation5 [shape = 'u8[65536]{0}', space=vmem, size = 0x10000, scoped, tag = 'input window, operand 1, single buffered']
    #allocation6 [shape = 's32[1]{0}', space=sflag, size = 0x4, scoped, tag = 'scoped memory for tpu_custom_call.1']
    #allocation7 [shape = 'u8[65536]{0}', space=vmem, size = 0x10000, scoped, tag = 'output window, operand 0, single buffered']
    %7 = vsyncpa [#allocation3], 0
    %8 = vsyncpa [#allocation6], 0
    %9 = vsyncpa [#allocation4], 0
    // Predicated region
    $region2: #{tpu_custom_call.1} parent=1 // pred_check
      _
    $region3: #{tpu_custom_call.1} parent=1 // pred_check_branch
      %11 = sbr.rel (0) target = $region5
    $region4: #{tpu_custom_call.1} parent=1 // pred_region
      %s13 = ssub.s32 2048, 2048
      %14 = vsyncadd [#allocation3], %s13
      %s15 = sshll.u32 [#allocation2], 4
      %s16 = int_to_ptr.vmem [resolvable:$true] %s15
      %21 = dma.hbm_to_vmem [thread:$0]  %s0, 2048, %s16, [#allocation3], 128, 128, 8
    $region5: #{tpu_custom_call.1} parent=1 // pred_fallthru
      _
    // Predicated region
    $region6: #{tpu_custom_call.1} parent=1 // pred_check
      _
    $region7: #{tpu_custom_call.1} parent=1 // pred_check_branch
      %23 = sbr.rel (0) target = $region9
    $region8: #{tpu_custom_call.1} parent=1 // pred_region
      %s25 = ssub.s32 2048, 2048
      %26 = vsyncadd [#allocation6], %s25
      %s27 = sshll.u32 [#allocation5], 4
      %s28 = int_to_ptr.vmem [resolvable:$true] %s27
      %33 = dma.hbm_to_vmem [thread:$0]  %s1, 2048, %s28, [#allocation6], 128, 128, 8
    $region9: #{tpu_custom_call.1} parent=1 // pred_fallthru
      _
    // Predicated region
    $region10: #{tpu_custom_call.1} parent=1 // pred_check
      _
    $region11: #{tpu_custom_call.1} parent=1 // pred_check_branch
      %35 = sbr.rel (0) target = $region13
    $region12: #{tpu_custom_call.1} parent=1 // pred_region
      %36 = dma.done [#allocation3], 2048
    $region13: #{tpu_custom_call.1} parent=1 // pred_fallthru
      _
    // Predicated region
    $region14: #{tpu_custom_call.1} parent=1 // pred_check
      _
    $region15: #{tpu_custom_call.1} parent=1 // pred_check_branch
      %38 = sbr.rel (0) target = $region17
    $region16: #{tpu_custom_call.1} parent=1 // pred_region
      %39 = dma.done [#allocation6], 2048
    $region17: #{tpu_custom_call.1} parent=1 // pred_fallthru
      _
    %v40 = vld [vmem:[#allocation2] sm:$0xff]
    %v41 = vld [vmem:[#allocation2 + $0x8] sm:$0xff]
    %v42 = vld [vmem:[#allocation2 + $0x10] sm:$0xff]
    %v43 = vld [vmem:[#allocation2 + $0x18] sm:$0xff]
    %v44 = vld [vmem:[#allocation2 + $0x20] sm:$0xff]
    %v45 = vld [vmem:[#allocation2 + $0x28] sm:$0xff]
    %v46 = vld [vmem:[#allocation2 + $0x30] sm:$0xff]
    %v47 = vld [vmem:[#allocation2 + $0x38] sm:$0xff]
    %v48 = vld [vmem:[#allocation2 + $0x40] sm:$0xff]
    %v49 = vld [vmem:[#allocation2 + $0x48] sm:$0xff]
    %v50 = vld [vmem:[#allocation2 + $0x50] sm:$0xff]
    %v51 = vld [vmem:[#allocation2 + $0x58] sm:$0xff]
    %v52 = vld [vmem:[#allocation2 + $0x60] sm:$0xff]
    %v53 = vld [vmem:[#allocation2 + $0x68] sm:$0xff]
    %v54 = vld [vmem:[#allocation2 + $0x70] sm:$0xff]
    %v55 = vld [vmem:[#allocation2 + $0x78] sm:$0xff]
    %v56 = vld [vmem:[#allocation5] sm:$0xff]
    %v57 = vld [vmem:[#allocation5 + $0x8] sm:$0xff]
    %v58 = vld [vmem:[#allocation5 + $0x10] sm:$0xff]
    %v59 = vld [vmem:[#allocation5 + $0x18] sm:$0xff]
    %v60 = vld [vmem:[#allocation5 + $0x20] sm:$0xff]
    %v61 = vld [vmem:[#allocation5 + $0x28] sm:$0xff]
    %v62 = vld [vmem:[#allocation5 + $0x30] sm:$0xff]
    %v63 = vld [vmem:[#allocation5 + $0x38] sm:$0xff]
    %v64 = vld [vmem:[#allocation5 + $0x40] sm:$0xff]
    %v65 = vld [vmem:[#allocation5 + $0x48] sm:$0xff]
    %v66 = vld [vmem:[#allocation5 + $0x50] sm:$0xff]
    %v67 = vld [vmem:[#allocation5 + $0x58] sm:$0xff]
    %v68 = vld [vmem:[#allocation5 + $0x60] sm:$0xff]
    %v69 = vld [vmem:[#allocation5 + $0x68] sm:$0xff]
    %v70 = vld [vmem:[#allocation5 + $0x70] sm:$0xff]
    %v71 = vld [vmem:[#allocation5 + $0x78] sm:$0xff]
    %72 = vmatprep.subr.mxu0 0.0
    %73 = vmatpush1.msra.mxu0 %v71
    %74 = vmatprep.subr.mxu0 0.0
    %75 = vmatpush1.msra.mxu0 %v70
    %76 = vmatprep.subr.mxu0 0.0
    %77 = vmatpush1.msra.mxu0 %v69
    %78 = vmatprep.subr.mxu0 0.0
    %79 = vmatpush1.msra.mxu0 %v68
    %80 = vmatprep.subr.mxu0 0.0
    %81 = vmatpush1.msra.mxu0 %v67
    %82 = vmatprep.subr.mxu0 0.0
    %83 = vmatpush1.msra.mxu0 %v66
    %84 = vmatprep.subr.mxu0 0.0
    %85 = vmatpush1.msra.mxu0 %v65
    %86 = vmatprep.subr.mxu0 0.0
    %87 = vmatpush1.msra.mxu0 %v64
    %88 = vmatprep.subr.mxu0 0.0
    %89 = vmatpush1.msra.mxu0 %v63
    %90 = vmatprep.subr.mxu0 0.0
    %91 = vmatpush1.msra.mxu0 %v62
    %92 = vmatprep.subr.mxu0 0.0
    %93 = vmatpush1.msra.mxu0 %v61
    %94 = vmatprep.subr.mxu0 0.0
    %95 = vmatpush1.msra.mxu0 %v60
    %96 = vmatprep.subr.mxu0 0.0
    %97 = vmatpush1.msra.mxu0 %v59
    %98 = vmatprep.subr.mxu0 0.0
    %99 = vmatpush1.msra.mxu0 %v58
    %100 = vmatprep.subr.mxu0 0.0
    %101 = vmatpush1.msra.mxu0 %v57
    %102 = vmatprep.subr.mxu0 0.0
    %103 = vmatpush1.msra.mxu0 %v56
    %104 = vmatprep.subr.mxu0 0.0
    %105 = vmatpush2.msra.mxu0 0.0
    %106 = vmatprep.subr.mxu0 0.0
    %107 = vmatpush2.msra.mxu0 0.0
    %108 = vmatprep.subr.mxu0 0.0
    %109 = vmatpush2.msra.mxu0 0.0
    %110 = vmatprep.subr.mxu0 0.0
    %111 = vmatpush2.msra.mxu0 0.0
    %112 = vmatprep.subr.mxu0 0.0
    %113 = vmatpush2.msra.mxu0 0.0
    %114 = vmatprep.subr.mxu0 0.0
    %115 = vmatpush2.msra.mxu0 0.0
    %116 = vmatprep.subr.mxu0 0.0
    %117 = vmatpush2.msra.mxu0 0.0
    %118 = vmatprep.subr.mxu0 0.0
    %119 = vmatpush2.msra.mxu0 0.0
    %120 = vmatprep.subr.mxu0 0.0
    %121 = vmatpush2.msra.mxu0 0.0
    %122 = vmatprep.subr.mxu0 0.0
    %123 = vmatpush2.msra.mxu0 0.0
    %124 = vmatprep.subr.mxu0 0.0
    %125 = vmatpush2.msra.mxu0 0.0
    %126 = vmatprep.subr.mxu0 0.0
    %127 = vmatpush2.msra.mxu0 0.0
    %128 = vmatprep.subr.mxu0 0.0
    %129 = vmatpush2.msra.mxu0 0.0
    %130 = vmatprep.subr.mxu0 0.0
    %131 = vmatpush2.msra.mxu0 0.0
    %132 = vmatprep.subr.mxu0 0.0
    %133 = vmatpush2.msra.mxu0 0.0
    %134 = vmatprep.subr.mxu0 0.0
    %135 = vmatpush2.msra.mxu0 0.0
    %136 = vmatprep.mubr.f32.mxu0 0.0
    %137 = vmatmul.mubr.f32.gmra.mxu0 %v40
    %v138 = vpop.f32.mrf.mxu0
    %v139 = vadd.f32 0.0, %v138
    %v140 = vpop.f32.mrf.mxu0
    %141 = vmatprep.mubr.f32.mxu0 0.0
    %142 = vmatmul.mubr.f32.gmra.mxu0 %v41
    %v143 = vpop.f32.mrf.mxu0
    %v144 = vadd.f32 0.0, %v143
    %v145 = vpop.f32.mrf.mxu0
    %146 = vmatprep.mubr.f32.mxu0 0.0
    %147 = vmatmul.mubr.f32.gmra.mxu0 %v42
    %v148 = vpop.f32.mrf.mxu0
    %v149 = vadd.f32 0.0, %v148
    %v150 = vpop.f32.mrf.mxu0
    %151 = vmatprep.mubr.f32.mxu0 0.0
    %152 = vmatmul.mubr.f32.gmra.mxu0 %v43
    %v153 = vpop.f32.mrf.mxu0
    %v154 = vadd.f32 0.0, %v153
    %v155 = vpop.f32.mrf.mxu0
    %156 = vmatprep.mubr.f32.mxu0 0.0
    %157 = vmatmul.mubr.f32.gmra.mxu0 %v44
    %v158 = vpop.f32.mrf.mxu0
    %v159 = vadd.f32 0.0, %v158
    %v160 = vpop.f32.mrf.mxu0
    %161 = vmatprep.mubr.f32.mxu0 0.0
    %162 = vmatmul.mubr.f32.gmra.mxu0 %v45
    %v163 = vpop.f32.mrf.mxu0
    %v164 = vadd.f32 0.0, %v163
    %v165 = vpop.f32.mrf.mxu0
    %166 = vmatprep.mubr.f32.mxu0 0.0
    %167 = vmatmul.mubr.f32.gmra.mxu0 %v46
    %v168 = vpop.f32.mrf.mxu0
    %v169 = vadd.f32 0.0, %v168
    %v170 = vpop.f32.mrf.mxu0
    %171 = vmatprep.mubr.f32.mxu0 0.0
    %172 = vmatmul.mubr.f32.gmra.mxu0 %v47
    %v173 = vpop.f32.mrf.mxu0
    %v174 = vadd.f32 0.0, %v173
    %v175 = vpop.f32.mrf.mxu0
    %176 = vmatprep.mubr.f32.mxu0 0.0
    %177 = vmatmul.mubr.f32.gmra.mxu0 %v48
    %v178 = vpop.f32.mrf.mxu0
    %v179 = vadd.f32 0.0, %v178
    %v180 = vpop.f32.mrf.mxu0
    %181 = vmatprep.mubr.f32.mxu0 0.0
    %182 = vmatmul.mubr.f32.gmra.mxu0 %v49
    %v183 = vpop.f32.mrf.mxu0
    %v184 = vadd.f32 0.0, %v183
    %v185 = vpop.f32.mrf.mxu0
    %186 = vmatprep.mubr.f32.mxu0 0.0
    %187 = vmatmul.mubr.f32.gmra.mxu0 %v50
    %v188 = vpop.f32.mrf.mxu0
    %v189 = vadd.f32 0.0, %v188
    %v190 = vpop.f32.mrf.mxu0
    %191 = vmatprep.mubr.f32.mxu0 0.0
    %192 = vmatmul.mubr.f32.gmra.mxu0 %v51
    %v193 = vpop.f32.mrf.mxu0
    %v194 = vadd.f32 0.0, %v193
    %v195 = vpop.f32.mrf.mxu0
    %196 = vmatprep.mubr.f32.mxu0 0.0
    %197 = vmatmul.mubr.f32.gmra.mxu0 %v52
    %v198 = vpop.f32.mrf.mxu0
    %v199 = vadd.f32 0.0, %v198
    %v200 = vpop.f32.mrf.mxu0
    %201 = vmatprep.mubr.f32.mxu0 0.0
    %202 = vmatmul.mubr.f32.gmra.mxu0 %v53
    %v203 = vpop.f32.mrf.mxu0
    %v204 = vadd.f32 0.0, %v203
    %v205 = vpop.f32.mrf.mxu0
    %206 = vmatprep.mubr.f32.mxu0 0.0
    %207 = vmatmul.mubr.f32.gmra.mxu0 %v54
    %v208 = vpop.f32.mrf.mxu0
    %v209 = vadd.f32 0.0, %v208
    %v210 = vpop.f32.mrf.mxu0
    %211 = vmatprep.mubr.f32.mxu0 0.0
    %212 = vmatmul.mubr.f32.gmra.mxu0 %v55
    %v213 = vpop.f32.mrf.mxu0
    %v214 = vadd.f32 0.0, %v213
    %v215 = vpop.f32.mrf.mxu0
    %216 = vdwg.mxu0
    %217 = vst [vmem:[#allocation7] sm:$0xff] %v139
    %218 = vst [vmem:[#allocation7 + $0x8] sm:$0xff] %v144
    %219 = vst [vmem:[#allocation7 + $0x10] sm:$0xff] %v149
    %220 = vst [vmem:[#allocation7 + $0x18] sm:$0xff] %v154
    %221 = vst [vmem:[#allocation7 + $0x20] sm:$0xff] %v159
    %222 = vst [vmem:[#allocation7 + $0x28] sm:$0xff] %v164
    %223 = vst [vmem:[#allocation7 + $0x30] sm:$0xff] %v169
    %224 = vst [vmem:[#allocation7 + $0x38] sm:$0xff] %v174
    %225 = vst [vmem:[#allocation7 + $0x40] sm:$0xff] %v179
    %226 = vst [vmem:[#allocation7 + $0x48] sm:$0xff] %v184
    %227 = vst [vmem:[#allocation7 + $0x50] sm:$0xff] %v189
    %228 = vst [vmem:[#allocation7 + $0x58] sm:$0xff] %v194
    %229 = vst [vmem:[#allocation7 + $0x60] sm:$0xff] %v199
    %230 = vst [vmem:[#allocation7 + $0x68] sm:$0xff] %v204
    %231 = vst [vmem:[#allocation7 + $0x70] sm:$0xff] %v209
    %232 = vst [vmem:[#allocation7 + $0x78] sm:$0xff] %v214
    // Predicated region
    $region18: #{tpu_custom_call.1} parent=1 // pred_check
      _
    $region19: #{tpu_custom_call.1} parent=1 // pred_check_branch
      %234 = sbr.rel (0) target = $region21
    $region20: #{tpu_custom_call.1} parent=1 // pred_region
      %s236 = ssub.s32 2048, 2048
      %237 = vsyncadd [#allocation4], %s236
      %s238 = sshll.u32 [#allocation7], 4
      %s239 = int_to_ptr.vmem [resolvable:$true] %s238
      %244 = dma.vmem_to_hbm [thread:$0]  %s239, 2048, %s2, [#allocation4], 128, 128, 8
    $region21: #{tpu_custom_call.1} parent=1 // pred_fallthru
      _
    // Predicated region
    $region22: #{tpu_custom_call.1} parent=1 // pred_check
      _
    $region23: #{tpu_custom_call.1} parent=1 // pred_check_branch
      %246 = sbr.rel (0) target = $region25
    $region24: #{tpu_custom_call.1} parent=1 // pred_region
      %247 = dma.done [#allocation4], 2048
    $region25: #{tpu_custom_call.1} parent=1 // pred_fallthru
      _
    %248 = vsyncpa [#allocation3], 1
    %249 = vsyncpa [#allocation6], 1
    %250 = vsyncpa [#allocation4], 1

</llo_original>
